<compile_context>
chip_gen: v7x
topology: tpu7x:2x2x1
jax: 0.10.0
libtpu: 0.0.40
codegen_flags: <defaults>
</compile_context>

<pallas_src>
import jax
import jax.numpy as jnp
from jax.experimental import pallas as pl
from jax.experimental.pallas import tpu as pltpu

_LANE = 128      # lane width: output last block dim is a multiple of this
_SUBLANE = 8     # f32 sublane granularity
_RP_WIDTH = 8    # lane width of the per-row (scale, clamped-mask) parameter block


def _round_up(a, b):
    return ((a + b - 1) // b) * b


def _sublane_multiple(dtype):
    # Sub-32-bit dtypes pack along sublanes: need multiples of 32/itemsize.
    return max(_SUBLANE, 32 // jnp.dtype(dtype).itemsize)


def _partial_conv_kernel(xp_ref, w_ref, b_ref, rp_ref, out_ref):
    """One M-tile of the partial convolution (im2col layout).

    xp_ref : (TM, Kp)  im2col patches of (X * mask)   (f32 or bf16)
    w_ref  : (Kp, Cp)  flattened, zero-padded weight  (f32 or bf16)
    b_ref  : (1, Cp)   zero-padded bias               (f32)
    rp_ref : (TM, 8)   per-row params: col0 = scale, col1 = clamped update mask (f32)
    out_ref: (TM, Cp)  masked / rescaled conv output  (f32)
    """
    # Single MXU matmul per tile; accumulation in f32.
    conv = jnp.dot(xp_ref[...], w_ref[...], preferred_element_type=jnp.float32)
    rp = rp_ref[...]                     # (TM, 8) f32, one load
    scale = rp[:, 0:1]                   # (TM, 1)
    umc = rp[:, 1:2]                     # (TM, 1)
    out_ref[...] = (conv * scale + b_ref[...]) * umc   # lane-dense store


def _im2col(x, k, stride, padding):
    """x: (N, C, H, W) -> patches (N*OH*OW, C*k*k) in (c, kh, kw) column order."""
    N, C, H, W = x.shape
    xp = jnp.pad(x, ((0, 0), (0, 0), (padding, padding), (padding, padding)))
    OH = (H + 2 * padding - k) // stride + 1
    OW = (W + 2 * padding - k) // stride + 1
    cols = []
    for i in range(k):
        for j in range(k):
            cols.append(xp[:, :, i:i + stride * OH:stride, j:j + stride * OW:stride])
    p = jnp.stack(cols, axis=0).reshape(k, k, N, C, OH, OW)
    p = p.transpose(2, 4, 5, 3, 0, 1).reshape(N * OH * OW, C * k * k)
    return p, OH, OW


def _plan_tiles(M, K_pad, C_out_pad, itemsize, requested_tile_m, vmem_budget_bytes,
                row_gran):
    """Largest tile_m (multiple of row_gran) whose pipeline fits the VMEM budget."""
    # weight + bias: constant index_map, single-buffered (pl.Buffered(1)).
    fixed = K_pad * C_out_pad * itemsize + C_out_pad * 4
    # streamed per row (double-buffered): patches in, row params in, conv out.
    per_row = 2 * (K_pad * itemsize + _RP_WIDTH * 4 + C_out_pad * 4)
    # in-kernel f32 temporaries (conv accumulator + scaled copies + possible relayout).
    per_row += 3 * C_out_pad * 4 + K_pad * 4
    tm = max(row_gran, min(requested_tile_m, _round_up(M, row_gran)))
    tm = _round_up(tm, row_gran)
    while tm > 128 and fixed + tm * per_row > vmem_budget_bytes:
        tm = _round_up(tm // 2, row_gran)
    # Keep >=2 grid steps (>=4 when there are plenty of rows) so both v7x
    # TensorCores get work under dimension_semantics=("parallel",).
    if M >= 4 * _LANE:
        tm = min(tm, _round_up(pl.cdiv(M, 4), row_gran))
    elif M > 2 * row_gran:
        tm = min(tm, _round_up(pl.cdiv(M, 2), row_gran))
    return tm, fixed + tm * per_row


def partial_conv2d(x, mask, weight, bias, *, kernel_size, stride=1, padding=0,
                   tile_m=1024, compute_dtype=jnp.float32, vmem_budget_bytes=None):
    """Forward pass of PartialConv2d (norm=None, activation=None).

    x, mask: (N, C_in, H, W) float32 (NCHW, like PyTorch; mask is 0/1)
    weight : (C_out, C_in, k, k) float32
    bias   : (C_out,) float32
    compute_dtype: dtype used to stream patches/weight (f32 or bf16; bf16 halves the
                   dominant HBM read bytes on every TPU generation).
    Returns (out, update_mask), both (N, C_out, OH, OW) float32.
    """
    N, C_in, H, W = x.shape
    C_out = weight.shape[0]
    k = kernel_size
    window_size = float(C_in * k * k)

    # ---- wrapper-side prep (tiny NCHW tensors; hot path is the Pallas kernel) ----
    # Fold the mask multiply into x before im2col (exact: mask is binary) -> the
    # kernel streams a single [M, K] patch matrix.
    xm = x * mask

    # Per-output-pixel mask sum via a single-output-channel ones-kernel conv; every
    # channel of the PyTorch mask conv is identical, so one channel suffices.
    ones_w = jnp.ones((1, C_in, k, k), jnp.float32)
    dn = jax.lax.conv_dimension_numbers(mask.shape, ones_w.shape, ("NCHW", "OIHW", "NCHW"))
    pad2 = [(padding, padding), (padding, padding)]
    um = jax.lax.conv_general_dilated(mask, ones_w, (stride, stride), pad2,
                                      dimension_numbers=dn)            # (N, 1, OH, OW)
    um_c = jnp.clip(um, 0.0, 1.0)
    scale = (window_size / (um + 1e-8)) * um_c

    xp, OH, OW = _im2col(xm, k, stride, padding)                        # (M, K)
    M, K = xp.shape

    # Lane-dense padding only where it matters: C_out -> 128 (unmasked output stores).
    # K is padded only to the sublane/packing multiple (full-array block dims are
    # exempt from the (8,128) rule).
    row_gran = _sublane_multiple(compute_dtype)
    K_pad = _round_up(K, row_gran)
    C_out_pad = _round_up(C_out, _LANE)

    itemsize = jnp.dtype(compute_dtype).itemsize
    try:
        vmem_cap = int(pltpu.get_tpu_info().vmem_capacity_bytes)
    except Exception:
        vmem_cap = 64 * 1024 * 1024        # conservative fallback (v7x per-TC VMEM)
    if vmem_budget_bytes is None:
        vmem_budget_bytes = int(0.70 * vmem_cap)

    tm, vmem_needed = _plan_tiles(M, K_pad, C_out_pad, itemsize, tile_m,
                                  vmem_budget_bytes, row_gran)
    M_pad = _round_up(M, tm)

    xp = jnp.pad(xp, ((0, M_pad - M), (0, K_pad - K))).astype(compute_dtype)

    # Flattened conv weight (K, C_out) matching the (c, kh, kw) im2col column order.
    w2d = weight.reshape(C_out, C_in * k * k).T
    w2d = jnp.pad(w2d, ((0, K_pad - K), (0, C_out_pad - C_out))).astype(compute_dtype)
    b2d = jnp.pad(bias.reshape(1, C_out), ((0, 0), (0, C_out_pad - C_out))).astype(jnp.float32)

    # Narrow per-row parameter block: col0 = scale, col1 = clamped update mask.
    # Padded rows are all-zero -> their output is exactly 0 and gets sliced off.
    rp = jnp.stack([scale.reshape(-1), um_c.reshape(-1)], axis=1)       # (M, 2)
    rp = jnp.pad(rp, ((0, M_pad - M), (0, _RP_WIDTH - 2))).astype(jnp.float32)

    def _const_spec(shape):
        idx = lambda i: (0,) * len(shape)
        try:
            # Constant-index blocks: drop the dead second pipeline buffer.
            return pl.BlockSpec(shape, idx, pipeline_mode=pl.Buffered(1))
        except (TypeError, AttributeError):
            return pl.BlockSpec(shape, idx)

    # Raise the scoped-VMEM limit only as far as needed; leave ~12.5% headroom below
    # physical VMEM for compiler-internal scratch (v7x-safe).
    vmem_limit = int(min(max(int(1.25 * vmem_needed), 32 * 1024 * 1024),
                         int(0.875 * vmem_cap)))

    out2d = pl.pallas_call(
        _partial_conv_kernel,
        out_shape=jax.ShapeDtypeStruct((M_pad, C_out_pad), jnp.float32),
        grid_spec=pltpu.PrefetchScalarGridSpec(
            num_scalar_prefetch=0,
            grid=(M_pad // tm,),
            in_specs=[
                pl.BlockSpec((tm, K_pad), lambda i: (i, 0)),       # patches of X*mask
                _const_spec((K_pad, C_out_pad)),                   # weight (invariant)
                _const_spec((1, C_out_pad)),                       # bias   (invariant)
                pl.BlockSpec((tm, _RP_WIDTH), lambda i: (i, 0)),   # per-row scale/mask
            ],
            out_specs=pl.BlockSpec((tm, C_out_pad), lambda i: (i, 0)),
        ),
        compiler_params=pltpu.CompilerParams(
            dimension_semantics=("parallel",),
            vmem_limit_bytes=vmem_limit,
        ),
    )(xp, w2d, b2d, rp)

    out = out2d[:M, :C_out].reshape(N, OH, OW, C_out).transpose(0, 3, 1, 2)
    update_mask = jnp.broadcast_to(um_c, (N, C_out, OH, OW))
    return out, update_mask


def _reference(x, mask, weight, bias, *, kernel_size, stride, padding,
               compute_dtype=jnp.float32):
    """Pure-JAX reference mirroring the PyTorch forward (verification only)."""
    dn = jax.lax.conv_dimension_numbers(x.shape, weight.shape, ("NCHW", "OIHW", "NCHW"))
    pad2 = [(padding, padding), (padding, padding)]
    ones_w = jnp.ones_like(weight)
    um = jax.lax.conv_general_dilated(mask, ones_w, (stride, stride), pad2,
                                      dimension_numbers=dn)
    C_in, k = x.shape[1], kernel_size
    scale = C_in * k * k / (um + 1e-8)
    um_c = jnp.clip(um, 0.0, 1.0)
    scale = scale * um_c
    xm = (x * mask).astype(compute_dtype)
    w = weight.astype(compute_dtype)
    y = jax.lax.conv_general_dilated(xm, w, (stride, stride), pad2, dimension_numbers=dn,
                                     preferred_element_type=jnp.float32)
    y = y * scale + bias.reshape(1, -1, 1, 1)
    y = y * um_c
    return y, um_c


if __name__ == "__main__":
    # Small shapes consistent with the module: NCHW input, same-shaped mask.
    N, C_in, H, W = 2, 4, 16, 16
    C_out, k, stride, padding = 8, 3, 1, 1

    key = jax.random.PRNGKey(0)
    k_x, k_m, k_w = jax.random.split(key, 3)

    x = jax.random.normal(k_x, (N, C_in, H, W), dtype=jnp.float32)
    # binary mask: 1 = valid, 0 = hole
    mask = (jax.random.uniform(k_m, (N, C_in, H, W)) > 0.3).astype(jnp.float32)

    # Deterministic "kaiming normal (fan_in, leaky_relu)" style init for the conv weight.
    fan_in = C_in * k * k
    gain = (2.0 / (1.0 + 0.01 ** 2)) ** 0.5
    std = gain / (fan_in ** 0.5)
    weight = std * jax.random.normal(k_w, (C_out, C_in, k, k), dtype=jnp.float32)
    bias = jnp.zeros((C_out,), dtype=jnp.float32)   # self.bias = nn.Parameter(torch.zeros(...))

    # --- f32 streaming (matches PyTorch numerics) ---
    out, update_mask = partial_conv2d(
        x, mask, weight, bias, kernel_size=k, stride=stride, padding=padding
    )
    out = jax.block_until_ready(out)
    update_mask = jax.block_until_ready(update_mask)

    ref_out, ref_um = _reference(
        x, mask, weight, bias, kernel_size=k, stride=stride, padding=padding
    )
    assert out.shape == (N, C_out, H, W) and update_mask.shape == (N, C_out, H, W)
    assert jnp.allclose(out, ref_out, atol=1e-4, rtol=1e-4)
    assert jnp.allclose(update_mask, ref_um, atol=1e-6)

    # --- bf16 streaming (all generations: halves dominant HBM reads; scale path f32) ---
    out_bf, um_bf = partial_conv2d(
        x, mask, weight, bias, kernel_size=k, stride=stride, padding=padding,
        compute_dtype=jnp.bfloat16,
    )
    out_bf = jax.block_until_ready(out_bf)
    ref_out_bf, _ = _reference(
        x, mask, weight, bias, kernel_size=k, stride=stride, padding=padding,
        compute_dtype=jnp.bfloat16,
    )
    assert jnp.allclose(out_bf, ref_out_bf, atol=2e-3, rtol=2e-2)
    assert jnp.allclose(um_bf, ref_um, atol=1e-6)

    print("KERNEL_OK")
</pallas_src>

<mosaic_0001>
module attributes {stable_mosaic.version = 11 : i64} {
  func.func @_partial_conv_kernel(%arg0: i32, %arg1: memref<128x40xf32, #tpu.memory_space<vmem>>, %arg2: memref<40x128xf32, #tpu.memory_space<vmem>>, %arg3: memref<1x128xf32, #tpu.memory_space<vmem>>, %arg4: memref<128x8xf32, #tpu.memory_space<vmem>>, %arg5: memref<128x128xf32, #tpu.memory_space<vmem>>) attributes {dimension_semantics = [#tpu.dimension_semantics<parallel>], iteration_bounds = array<i64: 4>, scalar_prefetch = 0 : i64, scratch_operands = 0 : i64, tpu.core_type = #tpu.core_type<tc>, window_params = [{transform_indices = @transform_0, window_bounds = array<i64: 128, 40>}, {pipeline_mode = #tpu.pipeline_mode<synchronous>, transform_indices = @transform_1, window_bounds = array<i64: 40, 128>}, {pipeline_mode = #tpu.pipeline_mode<synchronous>, transform_indices = @transform_2, window_bounds = array<i64: 1, 128>}, {transform_indices = @transform_3, window_bounds = array<i64: 128, 8>}, {transform_indices = @transform_4, window_bounds = array<i64: 128, 128>}]} {
    %c0 = arith.constant 0 : index
    %c0_0 = arith.constant 0 : index
    %0 = vector.load %arg1[%c0, %c0_0] : memref<128x40xf32, #tpu.memory_space<vmem>>, vector<128x40xf32>
    %c0_1 = arith.constant 0 : index
    %c0_2 = arith.constant 0 : index
    %1 = vector.load %arg2[%c0_1, %c0_2] : memref<40x128xf32, #tpu.memory_space<vmem>>, vector<40x128xf32>
    %cst = arith.constant dense<0.000000e+00> : vector<128x128xf32>
    %2 = tpu.matmul %0, %1, %cst {dimension_numbers = #tpu.dot_dimension_numbers<[1], [0], [0], [1], [0, 0, 1, 1], [], []>} : vector<128x40xf32>, vector<40x128xf32>, vector<128x128xf32> -> vector<128x128xf32>
    %c0_3 = arith.constant 0 : index
    %c0_4 = arith.constant 0 : index
    %3 = vector.load %arg4[%c0_3, %c0_4] : memref<128x8xf32, #tpu.memory_space<vmem>>, vector<128x8xf32>
    %4 = vector.extract_strided_slice %3 {offsets = [0, 0], sizes = [128, 1], strides = [1, 1]} : vector<128x8xf32> to vector<128x1xf32>
    %5 = vector.extract_strided_slice %3 {offsets = [0, 1], sizes = [128, 1], strides = [1, 1]} : vector<128x8xf32> to vector<128x1xf32>
    %6 = vector.broadcast %4 : vector<128x1xf32> to vector<128x128xf32>
    %7 = arith.mulf %2, %6 : vector<128x128xf32>
    %c0_5 = arith.constant 0 : index
    %c0_6 = arith.constant 0 : index
    %8 = vector.load %arg3[%c0_5, %c0_6] : memref<1x128xf32, #tpu.memory_space<vmem>>, vector<1x128xf32>
    %9 = vector.broadcast %8 : vector<1x128xf32> to vector<128x128xf32>
    %10 = arith.addf %7, %9 : vector<128x128xf32>
    %11 = vector.broadcast %5 : vector<128x1xf32> to vector<128x128xf32>
    %12 = arith.mulf %10, %11 : vector<128x128xf32>
    %c0_7 = arith.constant 0 : index
    %c0_8 = arith.constant 0 : index
    %13 = vector.load %arg5[%c0_7, %c0_8] : memref<128x128xf32, #tpu.memory_space<vmem>>, vector<128x128xf32>
    tpu.vector_store %arg5[%c0_7, %c0_8], %12 {strides = array<i32>} : memref<128x128xf32, #tpu.memory_space<vmem>>, vector<128x128xf32>,
    return
  }
  func.func @transform_0(%arg0: i32) -> (i32, i32) {
    %c0_i32 = arith.constant 0 : i32
    %c0_i32_0 = arith.constant 0 : i32
    return %arg0, %c0_i32 : i32, i32
  }
  func.func @transform_1(%arg0: i32) -> (i32, i32) {
    %c0_i32 = arith.constant 0 : i32
    %c0_i32_0 = arith.constant 0 : i32
    %c0_i32_1 = arith.constant 0 : i32
    return %c0_i32, %c0_i32_0 : i32, i32
  }
  func.func @transform_2(%arg0: i32) -> (i32, i32) {
    %c0_i32 = arith.constant 0 : i32
    %c0_i32_0 = arith.constant 0 : i32
    %c0_i32_1 = arith.constant 0 : i32
    return %c0_i32, %c0_i32_0 : i32, i32
  }
  func.func @transform_3(%arg0: i32) -> (i32, i32) {
    %c0_i32 = arith.constant 0 : i32
    %c0_i32_0 = arith.constant 0 : i32
    return %arg0, %c0_i32 : i32, i32
  }
  func.func @transform_4(%arg0: i32) -> (i32, i32) {
    %c0_i32 = arith.constant 0 : i32
    %c0_i32_0 = arith.constant 0 : i32
    return %arg0, %c0_i32 : i32, i32
  }
}

</mosaic_0001>

<llo_original>
// kernel: tpu_custom_call.1
$region0: #{tpu_custom_call.1}
  #allocation0 [shape = 'u32[]', space=smem, size = 0x4, offset = 0x4, fixed_abs, tag = 'smem constant byte address 0x4 - core index']
  #allocation1 [shape = 'u32[144,128]{1,0:T(1,128)}', space=vmem, size = 0x12000, scoped, tag = 'internal scratch']
  %s0 = inlined_call_operand.vmem [shape: f32[512,40], index: 0, kind: input, shape index: {}]
  %s1 = inlined_call_operand.vmem [shape: f32[40,128], index: 1, kind: input, shape index: {}]
  %s2 = inlined_call_operand.vmem [shape: f32[1,128], index: 2, kind: input, shape index: {}]
  %s3 = inlined_call_operand.vmem [shape: f32[512,8], index: 3, kind: input, shape index: {}]
  %s4 = inlined_call_operand.hbm [shape: f32[512,128], index: 4, kind: output, shape index: {}]
  %s5 = sld [smem:[#allocation0]]
  $region49: #{tpu_custom_call.1} parent=0
    _
  %s7 = ssub.s32 1, %s5
  %s8 = scalar_select 0, %s7, %s5
  $region1: #{tpu_custom_call.1} parent=0
    #allocation2 [shape = 'u8[131072]{0}', space=vmem, size = 0x20000, scoped, tag = 'output window, operand 0']
    #allocation3 [shape = 's32[2]{0}', space=sflag, size = 0x8, scoped, tag = 'scoped memory for tpu_custom_call.1']
    %9 = vsyncpa [#allocation3], 0
    %s10 = scalar_lea.sflag [#allocation3], 1
    %11 = vsyncpa %s10, 0
    loop: start=0, step=1, limit=6
    $region2: #{tpu_custom_call.1} parent=1 // loop_pre_header
      _
    $region3: #{tpu_custom_call.1} parent=1 // loop_header
      %s13 = sphi 0, %s17
      %p14 = scmp.ge.s32.totalorder %s13, 6
      %s23 = sphi 0, %s25
      %s26 = sphi 0, %s23
      %s27 = sphi 0, %s26
      %s43 = sphi 0, %s27
      %s47 = sphi 0, %s47
      %s49 = sphi 0, %s47
      %s50 = sphi 0, %s49
      %s64 = sphi 0, %s50
      %s68 = sphi 0, %s68
      %s70 = sphi 0, %s68
      %s71 = sphi 0, %s70
      %s85 = sphi 0, %s71
      %s91 = sphi 0, %s93
      %s94 = sphi 0, %s91
      %s95 = sphi 0, %s94
      %s111 = sphi 0, %s95
      %s117 = sphi 0, %s119
      %s120 = sphi 0, %s117
      %s121 = sphi 0, %s120
      %s137 = sphi 0, %s121
    $region4: #{tpu_custom_call.1} parent=1 // loop_header_branch
      %16 = sbr.rel (%p14) target = $region8
    $region5: #{tpu_custom_call.1} parent=1 // loop_body
      %s18 = ssub.s32 %s13, 1
      %s19 = ssub.s32 %s13, 2
      %s20 = sadd.s32 %s13, 1
      %s21 = ssub.s32 %s13, %s20
      %p22 = scmp.eq.s32.totalorder %s21, 0
      %s24 = sadd.s32 %s23, 1
      %s25 = scalar_select %p22, %s23, %s24
      %p28 = pneg %p22
      %p29 = scmp.eq.s32.totalorder %s13, 3
      %p30 = por %p28, %p29
      %p31 = scmp.ne.s32.totalorder %s23, %s26
      %p32 = scmp.eq.s32.totalorder %s13, 0
      %p33 = por %p31, %p32
      %p34 = scmp.ne.s32.totalorder %s23, %s26
      %p35 = scmp.eq.s32.totalorder %s18, 3
      %p36 = por %p34, %p35
      %p37 = scmp.ne.s32.totalorder %s26, %s27
      %p38 = scmp.eq.s32.totalorder %s18, 0
      %p39 = por %p37, %p38
      %p40 = scmp.ne.s32.totalorder %s26, %s27
      %p41 = scmp.eq.s32.totalorder %s19, 3
      %p42 = por %p40, %p41
      %p44 = scmp.ne.s32.totalorder %s27, %s43
      %p45 = scmp.eq.s32.totalorder %s19, 0
      %p46 = por %p44, %p45
      %s48 = sadd.s32 %s47, 1
      %p51 = scmp.eq.s32.totalorder %s13, 3
      %p52 = scmp.ne.s32.totalorder %s47, %s49
      %p53 = scmp.eq.s32.totalorder %s13, 0
      %p54 = por %p52, %p53
      %p55 = scmp.ne.s32.totalorder %s47, %s49
      %p56 = scmp.eq.s32.totalorder %s18, 3
      %p57 = por %p55, %p56
      %p58 = scmp.ne.s32.totalorder %s49, %s50
      %p59 = scmp.eq.s32.totalorder %s18, 0
      %p60 = por %p58, %p59
      %p61 = scmp.ne.s32.totalorder %s49, %s50
      %p62 = scmp.eq.s32.totalorder %s19, 3
      %p63 = por %p61, %p62
      %p65 = scmp.ne.s32.totalorder %s50, %s64
      %p66 = scmp.eq.s32.totalorder %s19, 0
      %p67 = por %p65, %p66
      %s69 = sadd.s32 %s68, 1
      %p72 = scmp.eq.s32.totalorder %s13, 3
      %p73 = scmp.ne.s32.totalorder %s68, %s70
      %p74 = scmp.eq.s32.totalorder %s13, 0
      %p75 = por %p73, %p74
      %p76 = scmp.ne.s32.totalorder %s68, %s70
      %p77 = scmp.eq.s32.totalorder %s18, 3
      %p78 = por %p76, %p77
      %p79 = scmp.ne.s32.totalorder %s70, %s71
      %p80 = scmp.eq.s32.totalorder %s18, 0
      %p81 = por %p79, %p80
      %p82 = scmp.ne.s32.totalorder %s70, %s71
      %p83 = scmp.eq.s32.totalorder %s19, 3
      %p84 = por %p82, %p83
      %p86 = scmp.ne.s32.totalorder %s71, %s85
      %p87 = scmp.eq.s32.totalorder %s19, 0
      %p88 = por %p86, %p87
      %s89 = ssub.s32 %s13, %s20
      %p90 = scmp.eq.s32.totalorder %s89, 0
      %s92 = sadd.s32 %s91, 1
      %s93 = scalar_select %p90, %s91, %s92
      %p96 = pneg %p90
      %p97 = scmp.eq.s32.totalorder %s13, 3
      %p98 = por %p96, %p97
      %p99 = scmp.ne.s32.totalorder %s91, %s94
      %p100 = scmp.eq.s32.totalorder %s13, 0
      %p101 = por %p99, %p100
      %p102 = scmp.ne.s32.totalorder %s91, %s94
      %p103 = scmp.eq.s32.totalorder %s18, 3
      %p104 = por %p102, %p103
      %p105 = scmp.ne.s32.totalorder %s94, %s95
      %p106 = scmp.eq.s32.totalorder %s18, 0
      %p107 = por %p105, %p106
      %p108 = scmp.ne.s32.totalorder %s94, %s95
      %p109 = scmp.eq.s32.totalorder %s19, 3
      %p110 = por %p108, %p109
      %p112 = scmp.ne.s32.totalorder %s95, %s111
      %p113 = scmp.eq.s32.totalorder %s19, 0
      %p114 = por %p112, %p113
      %s115 = ssub.s32 %s13, %s20
      %p116 = scmp.eq.s32.totalorder %s115, 0
      %s118 = sadd.s32 %s117, 1
      %s119 = scalar_select %p116, %s117, %s118
      %p122 = pneg %p116
      %p123 = scmp.eq.s32.totalorder %s13, 3
      %p124 = por %p122, %p123
      %p125 = scmp.ne.s32.totalorder %s117, %s120
      %p126 = scmp.eq.s32.totalorder %s13, 0
      %p127 = por %p125, %p126
      %p128 = scmp.ne.s32.totalorder %s117, %s120
      %p129 = scmp.eq.s32.totalorder %s18, 3
      %p130 = por %p128, %p129
      %p131 = scmp.ne.s32.totalorder %s120, %s121
      %p132 = scmp.eq.s32.totalorder %s18, 0
      %p133 = por %p131, %p132
      %p134 = scmp.ne.s32.totalorder %s120, %s121
      %p135 = scmp.eq.s32.totalorder %s19, 3
      %p136 = por %p134, %p135
      %p138 = scmp.ne.s32.totalorder %s121, %s137
      %p139 = scmp.eq.s32.totalorder %s19, 0
      %p140 = por %p138, %p139
      %p141 = scmp.le.s32.totalorder 1, %s13
      %p142 = scmp.lt.s32.totalorder %s13, 5
      %p143 = pnand %p141, %p142
      %p144 = pneg %p143
      // Predicated region
      $region9: #{tpu_custom_call.1} parent=5 // pred_check
        _
      $region10: #{tpu_custom_call.1} parent=5 // pred_check_branch
        %146 = sbr.rel (%p143) target = $region12
      $region11: #{tpu_custom_call.1} parent=5 // pred_region
        %s147 = ssub.s32 %s13, 1
        // Predicated region
        $region13: #{tpu_custom_call.1} parent=11 // pred_check
          %p148 = pneg %p60
        $region14: #{tpu_custom_call.1} parent=11 // pred_check_branch
          %150 = sbr.rel (%p148) target = $region16
        $region15: #{tpu_custom_call.1} parent=11 // pred_region
          _
        $region16: #{tpu_custom_call.1} parent=11 // pred_fallthru
          _
        // Predicated region
        $region17: #{tpu_custom_call.1} parent=11 // pred_check
          %p151 = pneg %p81
        $region18: #{tpu_custom_call.1} parent=11 // pred_check_branch
          %153 = sbr.rel (%p151) target = $region20
        $region19: #{tpu_custom_call.1} parent=11 // pred_region
          _
        $region20: #{tpu_custom_call.1} parent=11 // pred_fallthru
          _
      $region12: #{tpu_custom_call.1} parent=5 // pred_fallthru
        _
      %p154 = scmp.lt.s32.totalorder %s13, 4
      // Predicated region
      $region21: #{tpu_custom_call.1} parent=5 // pred_check
        %p155 = pneg %p154
      $region22: #{tpu_custom_call.1} parent=5 // pred_check_branch
        %157 = sbr.rel (%p155) target = $region24
      $region23: #{tpu_custom_call.1} parent=5 // pred_region
        // Predicated region
        $region25: #{tpu_custom_call.1} parent=23 // pred_check
          %p158 = pneg %p33
        $region26: #{tpu_custom_call.1} parent=23 // pred_check_branch
          %160 = sbr.rel (%p158) target = $region28
        $region27: #{tpu_custom_call.1} parent=23 // pred_region
          %s161 = smul.u32 16, %s13
          %p162 = scmp.lt.s32.totalorder %s161, 63
          %s163 = scalar_select %p162, %s161, 63
          %s164 = smul.addr %s163, 8
          %s165 = scalar_lea.vmem %s0, %s164
          %s166 = smul.u32 16, %s13
        $region28: #{tpu_custom_call.1} parent=23 // pred_fallthru
          _
        // Predicated region
        $region29: #{tpu_custom_call.1} parent=23 // pred_check
          %p167 = pneg %p101
        $region30: #{tpu_custom_call.1} parent=23 // pred_check_branch
          %169 = sbr.rel (%p167) target = $region32
        $region31: #{tpu_custom_call.1} parent=23 // pred_region
          %s170 = smul.u32 16, %s13
          %p171 = scmp.lt.s32.totalorder %s170, 63
          %s172 = scalar_select %p171, %s170, 63
          %s173 = smul.addr %s172, 8
          %s174 = scalar_lea.vmem %s3, %s173
          %s175 = smul.u32 16, %s13
        $region32: #{tpu_custom_call.1} parent=23 // pred_fallthru
          _
      $region24: #{tpu_custom_call.1} parent=5 // pred_fallthru
        _
      %p176 = scmp.le.s32.totalorder 1, %s13
      %p177 = scmp.lt.s32.totalorder %s13, 5
      %p178 = pnand %p176, %p177
      %p179 = pneg %p178
      // Predicated region
      $region33: #{tpu_custom_call.1} parent=5 // pred_check
        _
      $region34: #{tpu_custom_call.1} parent=5 // pred_check_branch
        %181 = sbr.rel (%p178) target = $region36
      $region35: #{tpu_custom_call.1} parent=5 // pred_region
        %s182 = ssub.s32 %s13, 1
        %s183 = smul.u32 16, %s18
        %p184 = scmp.lt.s32.totalorder %s183, 63
        %s185 = scalar_select %p184, %s183, 63
        %s186 = smul.addr %s185, 8
        %s187 = scalar_lea.vmem %s0, %s186
        %p188 = pneg %p39
        %p189 = pneg %p36
        %p190 = pneg %p60
        %p191 = pneg %p57
        %p192 = pneg %p81
        %p193 = pneg %p78
        %s194 = smul.u32 16, %s18
        %p195 = scmp.lt.s32.totalorder %s194, 63
        %s196 = scalar_select %p195, %s194, 63
        %s197 = smul.addr %s196, 8
        %s198 = scalar_lea.vmem %s3, %s197
        %p199 = pneg %p107
        %p200 = pneg %p104
        %p201 = pneg %p133
        %p202 = pneg %p130
        %s203 = sand.u32 %s120, 1
        %s204 = scalar_lea.sflag [#allocation3], %s203
        %s205 = sand.u32 %s120, 1
        %s206 = smul.addr %s205, 128
        %s207 = scalar_lea.vmem [#allocation2], %s206
        %s208 = smul.u32 16, %s18
        %p209 = scmp.lt.s32.totalorder %s208, 63
        %s210 = scalar_select %p209, %s208, 63
        %s211 = smul.addr %s210, 8
        %s212 = scalar_lea.vmem %s0, %s211
        %s213 = smul.u32 16, %s18
        %s214 = smul.u32 16, %s18
        %p215 = scmp.lt.s32.totalorder %s214, 63
        %s216 = scalar_select %p215, %s214, 63
        %s217 = smul.addr %s216, 8
        %s218 = scalar_lea.vmem %s3, %s217
        %s219 = smul.u32 16, %s18
        %s220 = smul.u32 16, %s18
        %v221 = vld [vmem:[%s212] sm:$0xff]
        %v222 = vld [vmem:[%s212 + $0x8] sm:$0xff]
        %v223 = vld [vmem:[%s212 + $0x10] sm:$0xff]
        %v224 = vld [vmem:[%s212 + $0x18] sm:$0xff]
        %v225 = vld [vmem:[%s212 + $0x20] sm:$0xff]
        %v226 = vld [vmem:[%s212 + $0x28] sm:$0xff]
        %v227 = vld [vmem:[%s212 + $0x30] sm:$0xff]
        %v228 = vld [vmem:[%s212 + $0x38] sm:$0xff]
        %v229 = vld [vmem:[%s212 + $0x40] sm:$0xff]
        %v230 = vld [vmem:[%s212 + $0x48] sm:$0xff]
        %v231 = vld [vmem:[%s212 + $0x50] sm:$0xff]
        %v232 = vld [vmem:[%s212 + $0x58] sm:$0xff]
        %v233 = vld [vmem:[%s212 + $0x60] sm:$0xff]
        %v234 = vld [vmem:[%s212 + $0x68] sm:$0xff]
        %v235 = vld [vmem:[%s212 + $0x70] sm:$0xff]
        %v236 = vld [vmem:[%s212 + $0x78] sm:$0xff]
        %v237 = vld [vmem:[%s1] sm:$0xff]
        %v238 = vld [vmem:[%s1 + $0x8] sm:$0xff]
        %v239 = vld [vmem:[%s1 + $0x10] sm:$0xff]
        %v240 = vld [vmem:[%s1 + $0x18] sm:$0xff]
        %v241 = vld [vmem:[%s1 + $0x20] sm:$0xff]
        %vm242 = vcmask 326656
        %v244 = vsel %vm242, %v221, 0
        %v247 = vsel %vm242, %v222, 0
        %v250 = vsel %vm242, %v223, 0
        %v253 = vsel %vm242, %v224, 0
        %v256 = vsel %vm242, %v225, 0
        %v259 = vsel %vm242, %v226, 0
        %v262 = vsel %vm242, %v227, 0
        %v265 = vsel %vm242, %v228, 0
        %v268 = vsel %vm242, %v229, 0
        %v271 = vsel %vm242, %v230, 0
        %v274 = vsel %vm242, %v231, 0
        %v277 = vsel %vm242, %v232, 0
        %v280 = vsel %vm242, %v233, 0
        %v283 = vsel %vm242, %v234, 0
        %v286 = vsel %vm242, %v235, 0
        %v289 = vsel %vm242, %v236, 0
        %291 = vmatprep.subr.mxu0 0.0
        %292 = vmatpush1.msra.mxu0 %v237
        %293 = vmatprep.subr.mxu0 0.0
        %294 = vmatpush1.msra.mxu0 %v238
        %295 = vmatprep.subr.mxu0 0.0
        %296 = vmatpush1.msra.mxu0 %v239
        %297 = vmatprep.subr.mxu0 0.0
        %298 = vmatpush1.msra.mxu0 %v240
        %299 = vmatprep.subr.mxu0 0.0
        %300 = vmatpush1.msra.mxu0 %v241
        %301 = vmatprep.subr.mxu0 0.0
        %302 = vmatpush1.msra.mxu0 0.0
        %303 = vmatprep.subr.mxu0 0.0
        %304 = vmatpush1.msra.mxu0 0.0
        %305 = vmatprep.subr.mxu0 0.0
        %306 = vmatpush1.msra.mxu0 0.0
        %307 = vmatprep.subr.mxu0 0.0
        %308 = vmatpush1.msra.mxu0 0.0
        %309 = vmatprep.subr.mxu0 0.0
        %310 = vmatpush1.msra.mxu0 0.0
        %311 = vmatprep.subr.mxu0 0.0
        %312 = vmatpush1.msra.mxu0 0.0
        %313 = vmatprep.subr.mxu0 0.0
        %314 = vmatpush1.msra.mxu0 0.0
        %315 = vmatprep.subr.mxu0 0.0
        %316 = vmatpush1.msra.mxu0 0.0
        %317 = vmatprep.subr.mxu0 0.0
        %318 = vmatpush1.msra.mxu0 0.0
        %319 = vmatprep.subr.mxu0 0.0
        %320 = vmatpush1.msra.mxu0 0.0
        %321 = vmatprep.subr.mxu0 0.0
        %322 = vmatpush1.msra.mxu0 0.0
        %323 = vmatprep.subr.mxu0 0.0
        %324 = vmatpush1.msra.mxu0 0.0
        %325 = vmatprep.subr.mxu0 0.0
        %326 = vmatpush1.msra.mxu0 0.0
        %327 = vmatprep.subr.mxu0 0.0
        %328 = vmatpush1.msra.mxu0 0.0
        %329 = vmatprep.subr.mxu0 0.0
        %330 = vmatpush1.msra.mxu0 0.0
        %331 = vmatprep.subr.mxu0 0.0
        %332 = vmatpush1.msra.mxu0 0.0
        %333 = vmatprep.subr.mxu0 0.0
        %334 = vmatpush1.msra.mxu0 0.0
        %335 = vmatprep.subr.mxu0 0.0
        %336 = vmatpush1.msra.mxu0 0.0
        %337 = vmatprep.subr.mxu0 0.0
        %338 = vmatpush1.msra.mxu0 0.0
        %339 = vmatprep.subr.mxu0 0.0
        %340 = vmatpush1.msra.mxu0 0.0
        %341 = vmatprep.subr.mxu0 0.0
        %342 = vmatpush1.msra.mxu0 0.0
        %343 = vmatprep.subr.mxu0 0.0
        %344 = vmatpush1.msra.mxu0 0.0
        %345 = vmatprep.subr.mxu0 0.0
        %346 = vmatpush1.msra.mxu0 0.0
        %347 = vmatprep.subr.mxu0 0.0
        %348 = vmatpush1.msra.mxu0 0.0
        %349 = vmatprep.subr.mxu0 0.0
        %350 = vmatpush1.msra.mxu0 0.0
        %351 = vmatprep.subr.mxu0 0.0
        %352 = vmatpush1.msra.mxu0 0.0
        %353 = vmatprep.subr.mxu0 0.0
        %354 = vmatpush1.msra.mxu0 0.0
        %355 = vmatprep.mubr.f32.mxu0 0.0
        %356 = vmatmul.mubr.f32.gmra.mrb[0].mxu0 %v244
        %v357 = vpop.f32.mrb[0].mxu0
        %v358 = vadd.f32 0.0, %v357
        %v359 = vpop.f32.mrb[0].mxu0
        %360 = vmatprep.mubr.f32.mxu0 0.0
        %361 = vmatmul.mubr.f32.gmra.mrb[0].mxu0 %v247
        %v362 = vpop.f32.mrb[0].mxu0
        %v363 = vadd.f32 0.0, %v362
        %v364 = vpop.f32.mrb[0].mxu0
        %365 = vmatprep.mubr.f32.mxu0 0.0
        %366 = vmatmul.mubr.f32.gmra.mrb[0].mxu0 %v250
        %v367 = vpop.f32.mrb[0].mxu0
        %v368 = vadd.f32 0.0, %v367
        %v369 = vpop.f32.mrb[0].mxu0
        %370 = vmatprep.mubr.f32.mxu0 0.0
        %371 = vmatmul.mubr.f32.gmra.mrb[0].mxu0 %v253
        %v372 = vpop.f32.mrb[0].mxu0
        %v373 = vadd.f32 0.0, %v372
        %v374 = vpop.f32.mrb[0].mxu0
        %375 = vmatprep.mubr.f32.mxu0 0.0
        %376 = vmatmul.mubr.f32.gmra.mrb[0].mxu0 %v256
        %v377 = vpop.f32.mrb[0].mxu0
        %v378 = vadd.f32 0.0, %v377
        %v379 = vpop.f32.mrb[0].mxu0
        %380 = vmatprep.mubr.f32.mxu0 0.0
        %381 = vmatmul.mubr.f32.gmra.mrb[0].mxu0 %v259
        %v382 = vpop.f32.mrb[0].mxu0
        %v383 = vadd.f32 0.0, %v382
        %v384 = vpop.f32.mrb[0].mxu0
        %385 = vmatprep.mubr.f32.mxu0 0.0
        %386 = vmatmul.mubr.f32.gmra.mrb[0].mxu0 %v262
        %v387 = vpop.f32.mrb[0].mxu0
        %v388 = vadd.f32 0.0, %v387
        %v389 = vpop.f32.mrb[0].mxu0
        %390 = vmatprep.mubr.f32.mxu0 0.0
        %391 = vmatmul.mubr.f32.gmra.mrb[0].mxu0 %v265
        %v392 = vpop.f32.mrb[0].mxu0
        %v393 = vadd.f32 0.0, %v392
        %v394 = vpop.f32.mrb[0].mxu0
        %395 = vmatprep.mubr.f32.mxu0 0.0
        %396 = vmatmul.mubr.f32.gmra.mrb[0].mxu0 %v268
        %v397 = vpop.f32.mrb[0].mxu0
        %v398 = vadd.f32 0.0, %v397
        %v399 = vpop.f32.mrb[0].mxu0
        %400 = vmatprep.mubr.f32.mxu0 0.0
        %401 = vmatmul.mubr.f32.gmra.mrb[0].mxu0 %v271
        %v402 = vpop.f32.mrb[0].mxu0
        %v403 = vadd.f32 0.0, %v402
        %v404 = vpop.f32.mrb[0].mxu0
        %405 = vmatprep.mubr.f32.mxu0 0.0
        %406 = vmatmul.mubr.f32.gmra.mrb[0].mxu0 %v274
        %v407 = vpop.f32.mrb[0].mxu0
        %v408 = vadd.f32 0.0, %v407
        %v409 = vpop.f32.mrb[0].mxu0
        %410 = vmatprep.mubr.f32.mxu0 0.0
        %411 = vmatmul.mubr.f32.gmra.mrb[0].mxu0 %v277
        %v412 = vpop.f32.mrb[0].mxu0
        %v413 = vadd.f32 0.0, %v412
        %v414 = vpop.f32.mrb[0].mxu0
        %415 = vmatprep.mubr.f32.mxu0 0.0
        %416 = vmatmul.mubr.f32.gmra.mrb[0].mxu0 %v280
        %v417 = vpop.f32.mrb[0].mxu0
        %v418 = vadd.f32 0.0, %v417
        %v419 = vpop.f32.mrb[0].mxu0
        %420 = vmatprep.mubr.f32.mxu0 0.0
        %421 = vmatmul.mubr.f32.gmra.mrb[0].mxu0 %v283
        %v422 = vpop.f32.mrb[0].mxu0
        %v423 = vadd.f32 0.0, %v422
        %v424 = vpop.f32.mrb[0].mxu0
        %425 = vmatprep.mubr.f32.mxu0 0.0
        %426 = vmatmul.mubr.f32.gmra.mrb[0].mxu0 %v286
        %v427 = vpop.f32.mrb[0].mxu0
        %v428 = vadd.f32 0.0, %v427
        %v429 = vpop.f32.mrb[0].mxu0
        %430 = vmatprep.mubr.f32.mxu0 0.0
        %431 = vmatmul.mubr.f32.gmra.mrb[0].mxu0 %v289
        %v432 = vpop.f32.mrb[0].mxu0
        %v433 = vadd.f32 0.0, %v432
        %v434 = vpop.f32.mrb[0].mxu0
        %435 = vdwg.mxu0
        %v436 = vld [vmem:[%s218] sm:$0xff]
        %v437 = vld [vmem:[%s218 + $0x8] sm:$0xff]
        %v438 = vld [vmem:[%s218 + $0x10] sm:$0xff]
        %v439 = vld [vmem:[%s218 + $0x18] sm:$0xff]
        %v440 = vld [vmem:[%s218 + $0x20] sm:$0xff]
        %v441 = vld [vmem:[%s218 + $0x28] sm:$0xff]
        %v442 = vld [vmem:[%s218 + $0x30] sm:$0xff]
        %v443 = vld [vmem:[%s218 + $0x38] sm:$0xff]
        %v444 = vld [vmem:[%s218 + $0x40] sm:$0xff]
        %v445 = vld [vmem:[%s218 + $0x48] sm:$0xff]
        %v446 = vld [vmem:[%s218 + $0x50] sm:$0xff]
        %v447 = vld [vmem:[%s218 + $0x58] sm:$0xff]
        %v448 = vld [vmem:[%s218 + $0x60] sm:$0xff]
        %v449 = vld [vmem:[%s218 + $0x68] sm:$0xff]
        %v450 = vld [vmem:[%s218 + $0x70] sm:$0xff]
        %v451 = vld [vmem:[%s218 + $0x78] sm:$0xff]
        %453 = vset.pattern.permute.xlu0 0
        %454 = vperm.xlu0 %453, %v436
        %v455 = vpop.permute.xlu0 %454
        %458 = vset.pattern.permute.xlu0 0
        %459 = vperm.xlu0 %458, %v437
        %v460 = vpop.permute.xlu0 %459
        %463 = vset.pattern.permute.xlu0 0
        %464 = vperm.xlu0 %463, %v438
        %v465 = vpop.permute.xlu0 %464
        %468 = vset.pattern.permute.xlu0 0
        %469 = vperm.xlu0 %468, %v439
        %v470 = vpop.permute.xlu0 %469
        %473 = vset.pattern.permute.xlu0 0
        %474 = vperm.xlu0 %473, %v440
        %v475 = vpop.permute.xlu0 %474
        %478 = vset.pattern.permute.xlu0 0
        %479 = vperm.xlu0 %478, %v441
        %v480 = vpop.permute.xlu0 %479
        %483 = vset.pattern.permute.xlu0 0
        %484 = vperm.xlu0 %483, %v442
        %v485 = vpop.permute.xlu0 %484
        %488 = vset.pattern.permute.xlu0 0
        %489 = vperm.xlu0 %488, %v443
        %v490 = vpop.permute.xlu0 %489
        %493 = vset.pattern.permute.xlu0 0
        %494 = vperm.xlu0 %493, %v444
        %v495 = vpop.permute.xlu0 %494
        %498 = vset.pattern.permute.xlu0 0
        %499 = vperm.xlu0 %498, %v445
        %v500 = vpop.permute.xlu0 %499
        %503 = vset.pattern.permute.xlu0 0
        %504 = vperm.xlu0 %503, %v446
        %v505 = vpop.permute.xlu0 %504
        %508 = vset.pattern.permute.xlu0 0
        %509 = vperm.xlu0 %508, %v447
        %v510 = vpop.permute.xlu0 %509
        %513 = vset.pattern.permute.xlu0 0
        %514 = vperm.xlu0 %513, %v448
        %v515 = vpop.permute.xlu0 %514
        %518 = vset.pattern.permute.xlu0 0
        %519 = vperm.xlu0 %518, %v449
        %v520 = vpop.permute.xlu0 %519
        %523 = vset.pattern.permute.xlu0 0
        %524 = vperm.xlu0 %523, %v450
        %v525 = vpop.permute.xlu0 %524
        %528 = vset.pattern.permute.xlu0 0
        %529 = vperm.xlu0 %528, %v451
        %v530 = vpop.permute.xlu0 %529
        %v532 = vmul.f32 %v358, %v455
        %v533 = vmul.f32 %v363, %v460
        %v534 = vmul.f32 %v368, %v465
        %v535 = vmul.f32 %v373, %v470
        %v536 = vmul.f32 %v378, %v475
        %v537 = vmul.f32 %v383, %v480
        %v538 = vmul.f32 %v388, %v485
        %v539 = vmul.f32 %v393, %v490
        %v540 = vmul.f32 %v398, %v495
        %v541 = vmul.f32 %v403, %v500
        %v542 = vmul.f32 %v408, %v505
        %v543 = vmul.f32 %v413, %v510
        %v544 = vmul.f32 %v418, %v515
        %v545 = vmul.f32 %v423, %v520
        %v546 = vmul.f32 %v428, %v525
        %v547 = vmul.f32 %v433, %v530
        %v548 = vld [vmem:[%s2] sm:$0x1]
        %v550 = vlaneseq
        %v551 = vshrl.u32 %v550, 7
        %v552 = vsub.s32 0, %v551
        %v553 = vrot.slane %v548, %v552
        %v555 = vadd.f32 %v532, %v553
        %v556 = vadd.f32 %v533, %v553
        %v557 = vadd.f32 %v534, %v553
        %v558 = vadd.f32 %v535, %v553
        %v559 = vadd.f32 %v536, %v553
        %v560 = vadd.f32 %v537, %v553
        %v561 = vadd.f32 %v538, %v553
        %v562 = vadd.f32 %v539, %v553
        %v563 = vadd.f32 %v540, %v553
        %v564 = vadd.f32 %v541, %v553
        %v565 = vadd.f32 %v542, %v553
        %v566 = vadd.f32 %v543, %v553
        %v567 = vadd.f32 %v544, %v553
        %v568 = vadd.f32 %v545, %v553
        %v569 = vadd.f32 %v546, %v553
        %v570 = vadd.f32 %v547, %v553
        %571 = vset.pattern.permute.xlu0 1
        %572 = vperm.xlu0 %571, %v436
        %v573 = vpop.permute.xlu0 %572
        %575 = vset.pattern.permute.xlu0 1
        %576 = vperm.xlu0 %575, %v437
        %v577 = vpop.permute.xlu0 %576
        %579 = vset.pattern.permute.xlu0 1
        %580 = vperm.xlu0 %579, %v438
        %v581 = vpop.permute.xlu0 %580
        %583 = vset.pattern.permute.xlu0 1
        %584 = vperm.xlu0 %583, %v439
        %v585 = vpop.permute.xlu0 %584
        %587 = vset.pattern.permute.xlu0 1
        %588 = vperm.xlu0 %587, %v440
        %v589 = vpop.permute.xlu0 %588
        %591 = vset.pattern.permute.xlu0 1
        %592 = vperm.xlu0 %591, %v441
        %v593 = vpop.permute.xlu0 %592
        %595 = vset.pattern.permute.xlu0 1
        %596 = vperm.xlu0 %595, %v442
        %v597 = vpop.permute.xlu0 %596
        %599 = vset.pattern.permute.xlu0 1
        %600 = vperm.xlu0 %599, %v443
        %v601 = vpop.permute.xlu0 %600
        %603 = vset.pattern.permute.xlu0 1
        %604 = vperm.xlu0 %603, %v444
        %v605 = vpop.permute.xlu0 %604
        %607 = vset.pattern.permute.xlu0 1
        %608 = vperm.xlu0 %607, %v445
        %v609 = vpop.permute.xlu0 %608
        %611 = vset.pattern.permute.xlu0 1
        %612 = vperm.xlu0 %611, %v446
        %v613 = vpop.permute.xlu0 %612
        %615 = vset.pattern.permute.xlu0 1
        %616 = vperm.xlu0 %615, %v447
        %v617 = vpop.permute.xlu0 %616
        %619 = vset.pattern.permute.xlu0 1
        %620 = vperm.xlu0 %619, %v448
        %v621 = vpop.permute.xlu0 %620
        %623 = vset.pattern.permute.xlu0 1
        %624 = vperm.xlu0 %623, %v449
        %v625 = vpop.permute.xlu0 %624
        %627 = vset.pattern.permute.xlu0 1
        %628 = vperm.xlu0 %627, %v450
        %v629 = vpop.permute.xlu0 %628
        %631 = vset.pattern.permute.xlu0 1
        %632 = vperm.xlu0 %631, %v451
        %v633 = vpop.permute.xlu0 %632
        %v635 = vmul.f32 %v555, %v573
        %v636 = vmul.f32 %v556, %v577
        %v637 = vmul.f32 %v557, %v581
        %v638 = vmul.f32 %v558, %v585
        %v639 = vmul.f32 %v559, %v589
        %v640 = vmul.f32 %v560, %v593
        %v641 = vmul.f32 %v561, %v597
        %v642 = vmul.f32 %v562, %v601
        %v643 = vmul.f32 %v563, %v605
        %v644 = vmul.f32 %v564, %v609
        %v645 = vmul.f32 %v565, %v613
        %v646 = vmul.f32 %v566, %v617
        %v647 = vmul.f32 %v567, %v621
        %v648 = vmul.f32 %v568, %v625
        %v649 = vmul.f32 %v569, %v629
        %v650 = vmul.f32 %v570, %v633
        %651 = vst [vmem:[%s207] sm:$0xff] %v635
        %652 = vst [vmem:[%s207 + $0x8] sm:$0xff] %v636
        %653 = vst [vmem:[%s207 + $0x10] sm:$0xff] %v637
        %654 = vst [vmem:[%s207 + $0x18] sm:$0xff] %v638
        %655 = vst [vmem:[%s207 + $0x20] sm:$0xff] %v639
        %656 = vst [vmem:[%s207 + $0x28] sm:$0xff] %v640
        %657 = vst [vmem:[%s207 + $0x30] sm:$0xff] %v641
        %658 = vst [vmem:[%s207 + $0x38] sm:$0xff] %v642
        %659 = vst [vmem:[%s207 + $0x40] sm:$0xff] %v643
        %660 = vst [vmem:[%s207 + $0x48] sm:$0xff] %v644
        %661 = vst [vmem:[%s207 + $0x50] sm:$0xff] %v645
        %662 = vst [vmem:[%s207 + $0x58] sm:$0xff] %v646
        %663 = vst [vmem:[%s207 + $0x60] sm:$0xff] %v647
        %664 = vst [vmem:[%s207 + $0x68] sm:$0xff] %v648
        %665 = vst [vmem:[%s207 + $0x70] sm:$0xff] %v649
        %666 = vst [vmem:[%s207 + $0x78] sm:$0xff] %v650
        %s667 = sand.u32 %s120, 1
        %s668 = scalar_lea.sflag [#allocation3], %s667
        %s669 = sand.u32 %s120, 1
        %s670 = smul.addr %s669, 128
        %s671 = scalar_lea.vmem [#allocation2], %s670
        // Predicated region
        $region37: #{tpu_custom_call.1} parent=35 // pred_check
          %p672 = pneg %p130
        $region38: #{tpu_custom_call.1} parent=35 // pred_check_branch
          %674 = sbr.rel (%p672) target = $region40
        $region39: #{tpu_custom_call.1} parent=35 // pred_region
          %s675 = smul.u32 16, %s18
          %s677 = ssub.s32 2048, 2048
          %678 = vsyncadd %s668, %s677
          %s679 = smul.addr %s675, 128
          %s680 = scalar_lea.hbm %s4, %s679
          %s681 = sshll.u32 %s671, 4
          %s682 = int_to_ptr.vmem [resolvable:$true] %s681
          %687 = dma.vmem_to_hbm [thread:$0]  %s682, 2048, %s680, %s668, 128, 128, 8
        $region40: #{tpu_custom_call.1} parent=35 // pred_fallthru
          _
      $region36: #{tpu_custom_call.1} parent=5 // pred_fallthru
        _
      %p688 = scmp.le.s32.totalorder 2, %s13
      // Predicated region
      $region41: #{tpu_custom_call.1} parent=5 // pred_check
        %p689 = pneg %p688
      $region42: #{tpu_custom_call.1} parent=5 // pred_check_branch
        %691 = sbr.rel (%p689) target = $region44
      $region43: #{tpu_custom_call.1} parent=5 // pred_region
        %s692 = ssub.s32 %s13, 2
        // Predicated region
        $region45: #{tpu_custom_call.1} parent=43 // pred_check
          %p693 = pneg %p136
        $region46: #{tpu_custom_call.1} parent=43 // pred_check_branch
          %695 = sbr.rel (%p693) target = $region48
        $region47: #{tpu_custom_call.1} parent=43 // pred_region
          %s696 = sand.u32 %s121, 1
          %s697 = scalar_lea.sflag [#allocation3], %s696
          %s698 = sand.u32 %s121, 1
          %s699 = smul.addr %s698, 128
          %s700 = scalar_lea.vmem [#allocation2], %s699
          %701 = dma.done %s697, 2048
        $region48: #{tpu_custom_call.1} parent=43 // pred_fallthru
          _
      $region44: #{tpu_custom_call.1} parent=5 // pred_fallthru
        _
    $region6: #{tpu_custom_call.1} parent=1 // loop_footer
      %s17 = sadd.s32 1, %s13
    $region7: #{tpu_custom_call.1} parent=1 // loop_footer_branch
      %12 = sbr.rel target = $region3
    $region8: #{tpu_custom_call.1} parent=1 // loop_exit
      _
    %702 = vsyncpa [#allocation3], 1
    %s703 = scalar_lea.sflag [#allocation3], 1
    %704 = vsyncpa %s703, 1

</llo_original>
